<compile_context>
chip_gen: v7x
topology: tpu7x:2x2x1
jax: 0.10.0
libtpu: 0.0.40
codegen_flags: <defaults>
</compile_context>

<pallas_src>
import functools

import jax
import jax.numpy as jnp
import numpy as np
from jax.experimental import pallas as pl
from jax.experimental.pallas import tpu as pltpu

EPS = 1e-5


def midblock_kernel(x_ref, w1_ref, w2_ref,
                    g1_ref, be1_ref, g2_ref, be2_ref,
                    o_ref, *, H, cout, inv_count, eps):
    NH, WC = o_ref.shape            # (N*H, W*Cout)

    # Row-within-image index; masks for the vertical SAME-padding borders.
    # Computed once, reused by both convs (hoisted, loop-invariant).
    row = jax.lax.broadcasted_iota(jnp.int32, (NH, 1), 0) % H
    not_top = row != 0              # rows whose "above" neighbour is real
    not_bot = row != (H - 1)        # rows whose "below" neighbour is real

    def taps(a):
        # Build the K-fused operand [above | same | below] in vregs with XLU
        # sublane rolls + border masks (no unaligned VMEM scratch round-trip),
        # then cast to bf16 for the MXU (accumulation stays f32).
        up = jnp.where(not_top, pltpu.roll(a, 1, 0), 0.0)
        dn = jnp.where(not_bot, pltpu.roll(a, NH - 1, 0), 0.0)
        return jnp.concatenate([up, a, dn], axis=-1).astype(jnp.bfloat16)

    def bn_relu(a, g_ref, b_ref):
        # One-sweep train-mode batch stats in f32.  Reduce + broadcast over
        # the W lane replicas of each channel with log2(W) cyclic lane rolls
        # (XLU) -- no MXU weight load, no pool matrix.
        s = jnp.concatenate([jnp.sum(a, axis=0, keepdims=True),
                             jnp.sum(a * a, axis=0, keepdims=True)],
                            axis=0)                              # (2, WC) f32
        shift = cout
        while shift < WC:                                        # static loop
            s = s + pltpu.roll(s, shift, 1)
            shift *= 2
        mean = s[0:1, :] * inv_count
        var = s[1:2, :] * inv_count - mean * mean                # biased var
        scale = g_ref[...] * jax.lax.rsqrt(var + eps)
        shiftv = b_ref[...] - mean * scale
        return jnp.maximum(a * scale + shiftv, 0.0)

    # conv1: single K-fused bf16 MXU matmul (K = 3*W*Cin), f32 accumulate.
    acc = jnp.dot(taps(x_ref[...]), w1_ref[...],
                  preferred_element_type=jnp.float32)
    h = bn_relu(acc, g1_ref, be1_ref)

    # conv2: single K-fused bf16 MXU matmul (K = 3*W*Cout), operands built
    # directly from h in vregs.
    acc2 = jnp.dot(taps(h), w2_ref[...], preferred_element_type=jnp.float32)
    o_ref[...] = bn_relu(acc2, g2_ref, be2_ref)


def _band_weights(w_oihw, W):
    """(Cout, Cin, 3, 3) torch conv weight -> (3*W*Cin, W*Cout) block-banded
    matrix with the three vertical taps stacked along K (dy = 0, 1, 2) and the
    horizontal SAME padding baked in as zero bands."""
    wk = jnp.transpose(w_oihw, (2, 3, 1, 0)).astype(jnp.float32)  # (3,3,Cin,Cout)
    Cin, Cout = wk.shape[2], wk.shape[3]
    mats = []
    for dy in range(3):
        m = jnp.zeros((W * Cin, W * Cout), jnp.float32)
        for dx in range(3):
            # shift[src, wx] = 1 iff src == wx + dx - 1 (truncation = W-pad).
            shift = jnp.eye(W, W, k=1 - dx, dtype=jnp.float32)
            m = m + jnp.kron(shift, wk[dy, dx])
        mats.append(m)
    return jnp.stack(mats).reshape(3 * W * Cin, W * Cout)


def midblock_forward(x_nchw, params):
    """x_nchw: (N, Cin, H, W) f32 -> (N, Cout, H, W) f32 (train-mode BN)."""
    w1, b1, g1, be1, w2, b2, g2, be2 = params
    del b1, b2  # exactly cancelled by the BN mean subtraction (train mode)
    N, Cin, H, W = x_nchw.shape
    Cout = w1.shape[0]
    WC = W * Cout
    assert W & (W - 1) == 0, "lane-roll BN reduction assumes W is a power of 2"

    # Lane-dense NHWC rows: one (N*H, W*Cin) f32 slab (no pre-shifted copies;
    # the vertical taps are generated in-kernel with sublane rolls).
    x = jnp.transpose(x_nchw, (0, 2, 3, 1)).astype(jnp.float32)
    x = x.reshape(N * H, W * Cin)

    # K-fused block-banded weights, bf16 for the MXU (halves weight VMEM/DMA).
    w1b = _band_weights(w1, W).astype(jnp.bfloat16)   # (3*W*Cin,  W*Cout)
    w2b = _band_weights(w2, W).astype(jnp.bfloat16)   # (3*W*Cout, W*Cout)

    to_lanes = lambda v: jnp.tile(v.astype(jnp.float32), W).reshape(1, WC)

    kernel = functools.partial(midblock_kernel, H=H, cout=Cout,
                               inv_count=1.0 / float(N * H * W), eps=EPS)

    out_flat = pl.pallas_call(
        kernel,
        out_shape=jax.ShapeDtypeStruct((N * H, WC), jnp.float32),  # lane-dense
        in_specs=[pl.BlockSpec(memory_space=pltpu.MemorySpace.VMEM)] * 7,
        out_specs=pl.BlockSpec(memory_space=pltpu.MemorySpace.VMEM),
    )(x, w1b, w2b, to_lanes(g1), to_lanes(be1), to_lanes(g2), to_lanes(be2))

    out = out_flat.reshape(N, H, W, Cout)
    return jnp.transpose(out, (0, 3, 1, 2))                       # back to NCHW


def ref_forward(x, params):
    """Pure-JAX f32 reference matching nn.Sequential(Conv, BN, ReLU, Conv, BN, ReLU)."""
    w1, b1, g1, be1, w2, b2, g2, be2 = params

    def conv(x, w, b):
        y = jax.lax.conv_general_dilated(
            x, w, window_strides=(1, 1), padding=((1, 1), (1, 1)),
            dimension_numbers=('NCHW', 'OIHW', 'NCHW'))
        return y + b[None, :, None, None]

    def bn_relu(y, g, be):
        mu = jnp.mean(y, axis=(0, 2, 3), keepdims=True)
        var = jnp.mean((y - mu) ** 2, axis=(0, 2, 3), keepdims=True)
        y = (y - mu) * jax.lax.rsqrt(var + EPS) * g[None, :, None, None] \
            + be[None, :, None, None]
        return jnp.maximum(y, 0.0)

    h = bn_relu(conv(x, w1, b1), g1, be1)
    return bn_relu(conv(h, w2, b2), g2, be2)


if __name__ == "__main__":
    # Small shapes consistent with the module: batch=2, in_d=4, out_d=8, 16x16.
    N, IN_D, OUT_D, H, W = 2, 4, 8, 16, 16

    key = jax.random.PRNGKey(0)
    kx, kw1, kb1, kw2, kb2 = jax.random.split(key, 5)

    x = jax.random.normal(kx, (N, IN_D, H, W), jnp.float32)

    # Conv weights/biases random; BN gamma=1, beta=0 (PyTorch default init).
    w1 = 0.1 * jax.random.normal(kw1, (OUT_D, IN_D, 3, 3), jnp.float32)
    b1 = 0.1 * jax.random.normal(kb1, (OUT_D,), jnp.float32)
    g1 = jnp.ones((OUT_D,), jnp.float32)
    be1 = jnp.zeros((OUT_D,), jnp.float32)
    w2 = 0.1 * jax.random.normal(kw2, (OUT_D, OUT_D, 3, 3), jnp.float32)
    b2 = 0.1 * jax.random.normal(kb2, (OUT_D,), jnp.float32)
    g2 = jnp.ones((OUT_D,), jnp.float32)
    be2 = jnp.zeros((OUT_D,), jnp.float32)

    params = (w1, b1, g1, be1, w2, b2, g2, be2)

    out = jax.block_until_ready(midblock_forward(x, params))
    ref = jax.block_until_ready(ref_forward(x, params))

    assert out.shape == (N, OUT_D, H, W), out.shape
    # Matmul operands are bf16 (f32 accumulation + f32 BN), reference is f32:
    # tolerance sized for bf16 operand rounding through two convs.
    np.testing.assert_allclose(np.asarray(out), np.asarray(ref),
                               rtol=2e-2, atol=2e-2)
    print("KERNEL_OK")
</pallas_src>

<mosaic_0001>
module attributes {stable_mosaic.version = 11 : i64} {
  func.func @midblock_kernel(%arg0: memref<32x64xf32, #tpu.memory_space<vmem>>, %arg1: memref<192x128xbf16, #tpu.memory_space<vmem>>, %arg2: memref<384x128xbf16, #tpu.memory_space<vmem>>, %arg3: memref<1x128xf32, #tpu.memory_space<vmem>>, %arg4: memref<1x128xf32, #tpu.memory_space<vmem>>, %arg5: memref<1x128xf32, #tpu.memory_space<vmem>>, %arg6: memref<1x128xf32, #tpu.memory_space<vmem>>, %arg7: memref<32x128xf32, #tpu.memory_space<vmem>>) attributes {dimension_semantics = [], scalar_prefetch = 0 : i64, scratch_operands = 0 : i64, tpu.core_type = #tpu.core_type<tc>} {
    %0 = tpu.iota {dimensions = array<i32: 0>} : vector<32x1xi32>
    %c16_i32 = arith.constant 16 : i32
    %c0_i32 = arith.constant 0 : i32
    %1 = arith.cmpi eq, %c16_i32, %c0_i32 : i32
    %c1_i32 = arith.constant 1 : i32
    %2 = arith.select %1, %c1_i32, %c16_i32 : i32
    %3 = vector.broadcast %2 : i32 to vector<32x1xi32>
    %4 = arith.remsi %0, %3 : vector<32x1xi32>
    %c0_i32_0 = arith.constant 0 : i32
    %5 = vector.broadcast %c0_i32_0 : i32 to vector<32x1xi32>
    %6 = arith.cmpi ne, %4, %5 : vector<32x1xi32>
    %c0_i32_1 = arith.constant 0 : i32
    %7 = vector.broadcast %c0_i32_1 : i32 to vector<32x1xi32>
    %8 = arith.cmpi slt, %4, %7 : vector<32x1xi32>
    %c0_i32_2 = arith.constant 0 : i32
    %9 = arith.cmpi slt, %2, %c0_i32_2 : i32
    %10 = vector.broadcast %9 : i1 to vector<32x1xi1>
    %11 = vector.broadcast %10 : vector<32x1xi1> to vector<32x1xi1>
    %12 = arith.xori %8, %11 : vector<32x1xi1>
    %13 = arith.andi %12, %6 : vector<32x1xi1>
    %14 = vector.broadcast %2 : i32 to vector<32x1xi32>
    %15 = arith.addi %4, %14 : vector<32x1xi32>
    %16 = arith.select %13, %15, %4 : vector<32x1xi1>, vector<32x1xi32>
    %c0_i32_3 = arith.constant 0 : i32
    %17 = vector.broadcast %c0_i32_3 : i32 to vector<32x1xi32>
    %18 = arith.cmpi ne, %16, %17 : vector<32x1xi32>
    %c15_i32 = arith.constant 15 : i32
    %19 = vector.broadcast %c15_i32 : i32 to vector<32x1xi32>
    %20 = arith.cmpi ne, %16, %19 : vector<32x1xi32>
    %c0 = arith.constant 0 : index
    %c0_4 = arith.constant 0 : index
    %21 = vector.load %arg0[%c0, %c0_4] : memref<32x64xf32, #tpu.memory_space<vmem>>, vector<32x64xf32>
    %c1_i32_5 = arith.constant 1 : i32
    %22 = tpu.dynamic_rotate %21 by %c1_i32_5 dim 0 : vector<32x64xf32>, i32 -> vector<32x64xf32>
    %cst = arith.constant 0.000000e+00 : f32
    %23 = vector.shape_cast %18 : vector<32x1xi1> to vector<32x1xi1>
    %24 = vector.broadcast %23 : vector<32x1xi1> to vector<32x64xi1>
    %25 = vector.broadcast %cst : f32 to vector<32x64xf32>
    %26 = arith.select %24, %22, %25 : vector<32x64xi1>, vector<32x64xf32>
    %c31_i32 = arith.constant 31 : i32
    %27 = tpu.dynamic_rotate %21 by %c31_i32 dim 0 : vector<32x64xf32>, i32 -> vector<32x64xf32>
    %cst_6 = arith.constant 0.000000e+00 : f32
    %28 = vector.shape_cast %20 : vector<32x1xi1> to vector<32x1xi1>
    %29 = vector.broadcast %28 : vector<32x1xi1> to vector<32x64xi1>
    %30 = vector.broadcast %cst_6 : f32 to vector<32x64xf32>
    %31 = arith.select %29, %27, %30 : vector<32x64xi1>, vector<32x64xf32>
    %32 = tpu.concatenate %26, %21, %31 in 1 : vector<32x64xf32>, vector<32x64xf32>, vector<32x64xf32> -> vector<32x192xf32>
    %33 = arith.truncf %32 : vector<32x192xf32> to vector<32x192xbf16>
    %c0_7 = arith.constant 0 : index
    %c0_8 = arith.constant 0 : index
    %34 = vector.load %arg1[%c0_7, %c0_8] : memref<192x128xbf16, #tpu.memory_space<vmem>>, vector<192x128xbf16>
    %cst_9 = arith.constant dense<0.000000e+00> : vector<32x128xf32>
    %35 = tpu.matmul %33, %34, %cst_9 {dimension_numbers = #tpu.dot_dimension_numbers<[1], [0], [0], [1], [0, 0, 1, 1], [], []>} : vector<32x192xbf16>, vector<192x128xbf16>, vector<32x128xf32> -> vector<32x128xf32>
    %cst_10 = arith.constant dense<0.000000e+00> : vector<128xf32>
    %36 = vector.multi_reduction <add>, %35, %cst_10 [0] : vector<32x128xf32> to vector<128xf32>
    %37 = vector.shape_cast %36 : vector<128xf32> to vector<1x128xf32>
    %38 = arith.mulf %35, %35 : vector<32x128xf32>
    %cst_11 = arith.constant dense<0.000000e+00> : vector<128xf32>
    %39 = vector.multi_reduction <add>, %38, %cst_11 [0] : vector<32x128xf32> to vector<128xf32>
    %40 = vector.shape_cast %39 : vector<128xf32> to vector<1x128xf32>
    %41 = tpu.concatenate %37, %40 in 0 : vector<1x128xf32>, vector<1x128xf32> -> vector<2x128xf32>
    %c8_i32 = arith.constant 8 : i32
    %42 = tpu.dynamic_rotate %41 by %c8_i32 dim 1 : vector<2x128xf32>, i32 -> vector<2x128xf32>
    %43 = arith.addf %41, %42 : vector<2x128xf32>
    %c16_i32_12 = arith.constant 16 : i32
    %44 = tpu.dynamic_rotate %43 by %c16_i32_12 dim 1 : vector<2x128xf32>, i32 -> vector<2x128xf32>
    %45 = arith.addf %43, %44 : vector<2x128xf32>
    %c32_i32 = arith.constant 32 : i32
    %46 = tpu.dynamic_rotate %45 by %c32_i32 dim 1 : vector<2x128xf32>, i32 -> vector<2x128xf32>
    %47 = arith.addf %45, %46 : vector<2x128xf32>
    %c64_i32 = arith.constant 64 : i32
    %48 = tpu.dynamic_rotate %47 by %c64_i32 dim 1 : vector<2x128xf32>, i32 -> vector<2x128xf32>
    %49 = arith.addf %47, %48 : vector<2x128xf32>
    %50 = vector.extract_strided_slice %49 {offsets = [0, 0], sizes = [1, 128], strides = [1, 1]} : vector<2x128xf32> to vector<1x128xf32>
    %cst_13 = arith.constant 0.001953125 : f32
    %51 = vector.broadcast %cst_13 : f32 to vector<1x128xf32>
    %52 = arith.mulf %50, %51 : vector<1x128xf32>
    %53 = vector.extract_strided_slice %49 {offsets = [1, 0], sizes = [1, 128], strides = [1, 1]} : vector<2x128xf32> to vector<1x128xf32>
    %cst_14 = arith.constant 0.001953125 : f32
    %54 = vector.broadcast %cst_14 : f32 to vector<1x128xf32>
    %55 = arith.mulf %53, %54 : vector<1x128xf32>
    %56 = arith.mulf %52, %52 : vector<1x128xf32>
    %57 = arith.subf %55, %56 : vector<1x128xf32>
    %c0_15 = arith.constant 0 : index
    %c0_16 = arith.constant 0 : index
    %58 = vector.load %arg3[%c0_15, %c0_16] : memref<1x128xf32, #tpu.memory_space<vmem>>, vector<1x128xf32>
    %cst_17 = arith.constant 9.99999974E-6 : f32
    %59 = vector.broadcast %cst_17 : f32 to vector<1x128xf32>
    %60 = arith.addf %57, %59 : vector<1x128xf32>
    %61 = math.rsqrt %60 : vector<1x128xf32>
    %62 = arith.mulf %58, %61 : vector<1x128xf32>
    %c0_18 = arith.constant 0 : index
    %c0_19 = arith.constant 0 : index
    %63 = vector.load %arg4[%c0_18, %c0_19] : memref<1x128xf32, #tpu.memory_space<vmem>>, vector<1x128xf32>
    %64 = arith.mulf %52, %62 : vector<1x128xf32>
    %65 = arith.subf %63, %64 : vector<1x128xf32>
    %66 = vector.broadcast %62 : vector<1x128xf32> to vector<32x128xf32>
    %67 = arith.mulf %35, %66 : vector<32x128xf32>
    %68 = vector.broadcast %65 : vector<1x128xf32> to vector<32x128xf32>
    %69 = arith.addf %67, %68 : vector<32x128xf32>
    %cst_20 = arith.constant 0.000000e+00 : f32
    %70 = vector.broadcast %cst_20 : f32 to vector<32x128xf32>
    %71 = arith.maximumf %69, %70 : vector<32x128xf32>
    %c1_i32_21 = arith.constant 1 : i32
    %72 = tpu.dynamic_rotate %71 by %c1_i32_21 dim 0 : vector<32x128xf32>, i32 -> vector<32x128xf32>
    %cst_22 = arith.constant 0.000000e+00 : f32
    %73 = vector.shape_cast %18 : vector<32x1xi1> to vector<32x1xi1>
    %74 = vector.broadcast %73 : vector<32x1xi1> to vector<32x128xi1>
    %75 = vector.broadcast %cst_22 : f32 to vector<32x128xf32>
    %76 = arith.select %74, %72, %75 : vector<32x128xi1>, vector<32x128xf32>
    %c31_i32_23 = arith.constant 31 : i32
    %77 = tpu.dynamic_rotate %71 by %c31_i32_23 dim 0 : vector<32x128xf32>, i32 -> vector<32x128xf32>
    %cst_24 = arith.constant 0.000000e+00 : f32
    %78 = vector.shape_cast %20 : vector<32x1xi1> to vector<32x1xi1>
    %79 = vector.broadcast %78 : vector<32x1xi1> to vector<32x128xi1>
    %80 = vector.broadcast %cst_24 : f32 to vector<32x128xf32>
    %81 = arith.select %79, %77, %80 : vector<32x128xi1>, vector<32x128xf32>
    %82 = tpu.concatenate %76, %71, %81 in 1 : vector<32x128xf32>, vector<32x128xf32>, vector<32x128xf32> -> vector<32x384xf32>
    %83 = arith.truncf %82 : vector<32x384xf32> to vector<32x384xbf16>
    %c0_25 = arith.constant 0 : index
    %c0_26 = arith.constant 0 : index
    %84 = vector.load %arg2[%c0_25, %c0_26] : memref<384x128xbf16, #tpu.memory_space<vmem>>, vector<384x128xbf16>
    %cst_27 = arith.constant dense<0.000000e+00> : vector<32x128xf32>
    %85 = tpu.matmul %83, %84, %cst_27 {dimension_numbers = #tpu.dot_dimension_numbers<[1], [0], [0], [1], [0, 0, 1, 1], [], []>} : vector<32x384xbf16>, vector<384x128xbf16>, vector<32x128xf32> -> vector<32x128xf32>
    %cst_28 = arith.constant dense<0.000000e+00> : vector<128xf32>
    %86 = vector.multi_reduction <add>, %85, %cst_28 [0] : vector<32x128xf32> to vector<128xf32>
    %87 = vector.shape_cast %86 : vector<128xf32> to vector<1x128xf32>
    %88 = arith.mulf %85, %85 : vector<32x128xf32>
    %cst_29 = arith.constant dense<0.000000e+00> : vector<128xf32>
    %89 = vector.multi_reduction <add>, %88, %cst_29 [0] : vector<32x128xf32> to vector<128xf32>
    %90 = vector.shape_cast %89 : vector<128xf32> to vector<1x128xf32>
    %91 = tpu.concatenate %87, %90 in 0 : vector<1x128xf32>, vector<1x128xf32> -> vector<2x128xf32>
    %c8_i32_30 = arith.constant 8 : i32
    %92 = tpu.dynamic_rotate %91 by %c8_i32_30 dim 1 : vector<2x128xf32>, i32 -> vector<2x128xf32>
    %93 = arith.addf %91, %92 : vector<2x128xf32>
    %c16_i32_31 = arith.constant 16 : i32
    %94 = tpu.dynamic_rotate %93 by %c16_i32_31 dim 1 : vector<2x128xf32>, i32 -> vector<2x128xf32>
    %95 = arith.addf %93, %94 : vector<2x128xf32>
    %c32_i32_32 = arith.constant 32 : i32
    %96 = tpu.dynamic_rotate %95 by %c32_i32_32 dim 1 : vector<2x128xf32>, i32 -> vector<2x128xf32>
    %97 = arith.addf %95, %96 : vector<2x128xf32>
    %c64_i32_33 = arith.constant 64 : i32
    %98 = tpu.dynamic_rotate %97 by %c64_i32_33 dim 1 : vector<2x128xf32>, i32 -> vector<2x128xf32>
    %99 = arith.addf %97, %98 : vector<2x128xf32>
    %100 = vector.extract_strided_slice %99 {offsets = [0, 0], sizes = [1, 128], strides = [1, 1]} : vector<2x128xf32> to vector<1x128xf32>
    %cst_34 = arith.constant 0.001953125 : f32
    %101 = vector.broadcast %cst_34 : f32 to vector<1x128xf32>
    %102 = arith.mulf %100, %101 : vector<1x128xf32>
    %103 = vector.extract_strided_slice %99 {offsets = [1, 0], sizes = [1, 128], strides = [1, 1]} : vector<2x128xf32> to vector<1x128xf32>
    %cst_35 = arith.constant 0.001953125 : f32
    %104 = vector.broadcast %cst_35 : f32 to vector<1x128xf32>
    %105 = arith.mulf %103, %104 : vector<1x128xf32>
    %106 = arith.mulf %102, %102 : vector<1x128xf32>
    %107 = arith.subf %105, %106 : vector<1x128xf32>
    %c0_36 = arith.constant 0 : index
    %c0_37 = arith.constant 0 : index
    %108 = vector.load %arg5[%c0_36, %c0_37] : memref<1x128xf32, #tpu.memory_space<vmem>>, vector<1x128xf32>
    %cst_38 = arith.constant 9.99999974E-6 : f32
    %109 = vector.broadcast %cst_38 : f32 to vector<1x128xf32>
    %110 = arith.addf %107, %109 : vector<1x128xf32>
    %111 = math.rsqrt %110 : vector<1x128xf32>
    %112 = arith.mulf %108, %111 : vector<1x128xf32>
    %c0_39 = arith.constant 0 : index
    %c0_40 = arith.constant 0 : index
    %113 = vector.load %arg6[%c0_39, %c0_40] : memref<1x128xf32, #tpu.memory_space<vmem>>, vector<1x128xf32>
    %114 = arith.mulf %102, %112 : vector<1x128xf32>
    %115 = arith.subf %113, %114 : vector<1x128xf32>
    %116 = vector.broadcast %112 : vector<1x128xf32> to vector<32x128xf32>
    %117 = arith.mulf %85, %116 : vector<32x128xf32>
    %118 = vector.broadcast %115 : vector<1x128xf32> to vector<32x128xf32>
    %119 = arith.addf %117, %118 : vector<32x128xf32>
    %cst_41 = arith.constant 0.000000e+00 : f32
    %120 = vector.broadcast %cst_41 : f32 to vector<32x128xf32>
    %121 = arith.maximumf %119, %120 : vector<32x128xf32>
    %c0_42 = arith.constant 0 : index
    %c0_43 = arith.constant 0 : index
    %122 = vector.load %arg7[%c0_42, %c0_43] : memref<32x128xf32, #tpu.memory_space<vmem>>, vector<32x128xf32>
    tpu.vector_store %arg7[%c0_42, %c0_43], %121 {strides = array<i32>} : memref<32x128xf32, #tpu.memory_space<vmem>>, vector<32x128xf32>,
    return
  }
}

</mosaic_0001>

<llo_original>
// kernel: tpu_custom_call.1
$region0: #{tpu_custom_call.1}
  #allocation0 [shape = 'u32[]', space=smem, size = 0x4, offset = 0x4, fixed_abs, tag = 'smem constant byte address 0x4 - core index']
  #allocation1 [shape = 'u32[144,128]{1,0:T(1,128)}', space=vmem, size = 0x12000, scoped, tag = 'internal scratch']
  %s0 = inlined_call_operand.hbm [shape: f32[32,64], index: 0, kind: input, shape index: {}]
  %s1 = inlined_call_operand.hbm [shape: bf16[192,128], index: 1, kind: input, shape index: {}]
  %s2 = inlined_call_operand.hbm [shape: bf16[384,128], index: 2, kind: input, shape index: {}]
  %s3 = inlined_call_operand.vmem [shape: f32[1,128], index: 3, kind: input, shape index: {}]
  %s4 = inlined_call_operand.vmem [shape: f32[1,128], index: 4, kind: input, shape index: {}]
  %s5 = inlined_call_operand.vmem [shape: f32[1,128], index: 5, kind: input, shape index: {}]
  %s6 = inlined_call_operand.vmem [shape: f32[1,128], index: 6, kind: input, shape index: {}]
  %s7 = inlined_call_operand.hbm [shape: f32[32,128], index: 7, kind: output, shape index: {}]
  %s8 = sld [smem:[#allocation0]]
  $region50: #{tpu_custom_call.1} parent=0
    _
  %s10 = ssub.s32 1, %s8
  %s11 = scalar_select 0, %s10, %s8
  $region1: #{tpu_custom_call.1} parent=0
    #allocation2 [shape = 'u8[16384]{0}', space=vmem, size = 0x4000, scoped, tag = 'input window, operand 0, single buffered']
    #allocation3 [shape = 's32[1]{0}', space=sflag, size = 0x4, scoped, tag = 'scoped memory for tpu_custom_call.1']
    #allocation4 [shape = 's32[1]{0}', space=sflag, size = 0x4, scoped, tag = 'scoped memory for tpu_custom_call.1']
    #allocation5 [shape = 'u8[49152]{0}', space=vmem, size = 0xc000, scoped, tag = 'input window, operand 1, single buffered']
    #allocation6 [shape = 's32[1]{0}', space=sflag, size = 0x4, scoped, tag = 'scoped memory for tpu_custom_call.1']
    #allocation7 [shape = 'u8[98304]{0}', space=vmem, size = 0x18000, scoped, tag = 'input window, operand 2, single buffered']
    #allocation8 [shape = 'u8[16384]{0}', space=vmem, size = 0x4000, scoped, tag = 'output window, operand 0, single buffered']
    %12 = vsyncpa [#allocation3], 0
    %13 = vsyncpa [#allocation6], 0
    %14 = vsyncpa [#allocation4], 0
    // Predicated region
    $region2: #{tpu_custom_call.1} parent=1 // pred_check
      _
    $region3: #{tpu_custom_call.1} parent=1 // pred_check_branch
      %16 = sbr.rel (0) target = $region5
    $region4: #{tpu_custom_call.1} parent=1 // pred_region
      %s18 = ssub.s32 512, 512
      %19 = vsyncadd [#allocation3], %s18
      %s20 = sshll.u32 [#allocation2], 4
      %s21 = int_to_ptr.vmem [resolvable:$true] %s20
      %26 = dma.hbm_to_vmem [thread:$0]  %s0, 512, %s21, [#allocation3], 128, 128, 8
    $region5: #{tpu_custom_call.1} parent=1 // pred_fallthru
      _
    // Predicated region
    $region6: #{tpu_custom_call.1} parent=1 // pred_check
      _
    $region7: #{tpu_custom_call.1} parent=1 // pred_check_branch
      %28 = sbr.rel (0) target = $region9
    $region8: #{tpu_custom_call.1} parent=1 // pred_region
      %s30 = ssub.s32 1536, 1536
      %31 = vsyncadd [#allocation6], %s30
      %s32 = sshll.u32 [#allocation5], 4
      %s33 = int_to_ptr.vmem [resolvable:$true] %s32
      %38 = dma.hbm_to_vmem [thread:$0]  %s1, 1536, %s33, [#allocation6], 64, 64, 4
    $region9: #{tpu_custom_call.1} parent=1 // pred_fallthru
      _
    // Predicated region
    $region10: #{tpu_custom_call.1} parent=1 // pred_check
      _
    $region11: #{tpu_custom_call.1} parent=1 // pred_check_branch
      %40 = sbr.rel (0) target = $region13
    $region12: #{tpu_custom_call.1} parent=1 // pred_region
      %s42 = ssub.s32 3072, 3072
      %43 = vsyncadd [#allocation6], %s42
      %s44 = sshll.u32 [#allocation7], 4
      %s45 = int_to_ptr.vmem [resolvable:$true] %s44
      %50 = dma.hbm_to_vmem [thread:$0]  %s2, 3072, %s45, [#allocation6], 64, 64, 4
    $region13: #{tpu_custom_call.1} parent=1 // pred_fallthru
      _
    // Predicated region
    $region14: #{tpu_custom_call.1} parent=1 // pred_check
      _
    $region15: #{tpu_custom_call.1} parent=1 // pred_check_branch
      %52 = sbr.rel (0) target = $region17
    $region16: #{tpu_custom_call.1} parent=1 // pred_region
      _
    $region17: #{tpu_custom_call.1} parent=1 // pred_fallthru
      _
    // Predicated region
    $region18: #{tpu_custom_call.1} parent=1 // pred_check
      _
    $region19: #{tpu_custom_call.1} parent=1 // pred_check_branch
      %54 = sbr.rel (0) target = $region21
    $region20: #{tpu_custom_call.1} parent=1 // pred_region
      _
    $region21: #{tpu_custom_call.1} parent=1 // pred_fallthru
      _
    // Predicated region
    $region22: #{tpu_custom_call.1} parent=1 // pred_check
      _
    $region23: #{tpu_custom_call.1} parent=1 // pred_check_branch
      %56 = sbr.rel (0) target = $region25
    $region24: #{tpu_custom_call.1} parent=1 // pred_region
      _
    $region25: #{tpu_custom_call.1} parent=1 // pred_fallthru
      _
    // Predicated region
    $region26: #{tpu_custom_call.1} parent=1 // pred_check
      _
    $region27: #{tpu_custom_call.1} parent=1 // pred_check_branch
      %58 = sbr.rel (0) target = $region29
    $region28: #{tpu_custom_call.1} parent=1 // pred_region
      _
    $region29: #{tpu_custom_call.1} parent=1 // pred_fallthru
      _
    // Predicated region
    $region30: #{tpu_custom_call.1} parent=1 // pred_check
      _
    $region31: #{tpu_custom_call.1} parent=1 // pred_check_branch
      %60 = sbr.rel (0) target = $region33
    $region32: #{tpu_custom_call.1} parent=1 // pred_region
      %61 = dma.done [#allocation3], 512
    $region33: #{tpu_custom_call.1} parent=1 // pred_fallthru
      _
    // Predicated region
    $region34: #{tpu_custom_call.1} parent=1 // pred_check
      _
    $region35: #{tpu_custom_call.1} parent=1 // pred_check_branch
      %63 = sbr.rel (0) target = $region37
    $region36: #{tpu_custom_call.1} parent=1 // pred_region
      %64 = dma.done [#allocation6], 1536
    $region37: #{tpu_custom_call.1} parent=1 // pred_fallthru
      _
    // Predicated region
    $region38: #{tpu_custom_call.1} parent=1 // pred_check
      _
    $region39: #{tpu_custom_call.1} parent=1 // pred_check_branch
      %66 = sbr.rel (0) target = $region41
    $region40: #{tpu_custom_call.1} parent=1 // pred_region
      %67 = dma.done [#allocation6], 3072
    $region41: #{tpu_custom_call.1} parent=1 // pred_fallthru
      _
    %v69 = vlaneseq
    %v70 = vshrl.u32 %v69, 7
    %v71 = vadd.s32 %v70, 8
    %v72 = vadd.s32 %v70, 16
    %v73 = vadd.s32 %v70, 24
    %vm74 = vcmp.lt.s32.totalorder %v70, 0
    %v75 = vsub.s32 0, %v70
    %v76 = vsel %vm74, %v75, %v70
    %v77 = vshrl.u32 %v76, 4
    %v78 = vand.u32 %v76, 15
    %v79 = vsub.s32 0, %v78
    %v80 = vsel %vm74, %v79, %v78
    %vm81 = vcmp.lt.s32.totalorder %v71, 0
    %v82 = vsub.s32 0, %v71
    %v83 = vsel %vm81, %v82, %v71
    %v84 = vshrl.u32 %v83, 4
    %v85 = vand.u32 %v83, 15
    %v86 = vsub.s32 0, %v85
    %v87 = vsel %vm81, %v86, %v85
    %vm88 = vcmp.lt.s32.totalorder %v72, 0
    %v89 = vsub.s32 0, %v72
    %v90 = vsel %vm88, %v89, %v72
    %v91 = vshrl.u32 %v90, 4
    %v92 = vand.u32 %v90, 15
    %v93 = vsub.s32 0, %v92
    %v94 = vsel %vm88, %v93, %v92
    %vm95 = vcmp.lt.s32.totalorder %v73, 0
    %v96 = vsub.s32 0, %v73
    %v97 = vsel %vm95, %v96, %v73
    %v98 = vshrl.u32 %v97, 4
    %v99 = vand.u32 %v97, 15
    %v100 = vsub.s32 0, %v99
    %v101 = vsel %vm95, %v100, %v99
    %vm102 = vcmp.ne.s32.totalorder %v80, 0
    %vm103 = vcmp.ne.s32.totalorder %v87, 0
    %vm104 = vcmp.ne.s32.totalorder %v94, 0
    %vm105 = vcmp.ne.s32.totalorder %v101, 0
    %vm106 = vcmp.lt.s32.totalorder %v80, 0
    %vm107 = vcmp.lt.s32.totalorder %v87, 0
    %vm108 = vcmp.lt.s32.totalorder %v94, 0
    %vm109 = vcmp.lt.s32.totalorder %v101, 0
    %vm110 = vmand %vm106, %vm102
    %vm111 = vmand %vm107, %vm103
    %vm112 = vmand %vm108, %vm104
    %vm113 = vmand %vm109, %vm105
    %v114 = vadd.s32 %v80, 16
    %v115 = vadd.s32 %v87, 16
    %v116 = vadd.s32 %v94, 16
    %v117 = vadd.s32 %v101, 16
    %v118 = vsel %vm110, %v114, %v80
    %v119 = vsel %vm111, %v115, %v87
    %v120 = vsel %vm112, %v116, %v94
    %v121 = vsel %vm113, %v117, %v101
    %vm122 = vcmp.ne.s32.totalorder %v118, 0
    %vm123 = vcmp.ne.s32.totalorder %v119, 0
    %vm124 = vcmp.ne.s32.totalorder %v120, 0
    %vm125 = vcmp.ne.s32.totalorder %v121, 0
    %vm126 = vcmp.ne.s32.totalorder %v118, 15
    %vm127 = vcmp.ne.s32.totalorder %v119, 15
    %vm128 = vcmp.ne.s32.totalorder %v120, 15
    %vm129 = vcmp.ne.s32.totalorder %v121, 15
    %v130 = vld [vmem:[#allocation2] sm:$0xff]
    %v131 = vld [vmem:[#allocation2 + $0x8] sm:$0xff]
    %v132 = vld [vmem:[#allocation2 + $0x10] sm:$0xff]
    %v133 = vld [vmem:[#allocation2 + $0x18] sm:$0xff]
    %v134 = vrot.slane %v130, 7
    %v135 = vrot.slane %v131, 7
    %v136 = vrot.slane %v132, 7
    %v137 = vrot.slane %v133, 7
    %vm138 = vcmp.lt.s32.totalorder %v70, 1
    %v139 = vsel %vm138, %v136, %v137
    %v140 = vsel %vm138, %v135, %v136
    %v141 = vsel %vm138, %v134, %v135
    %v142 = vsel %vm138, %v137, %v134
    %v143 = vsel %vm122, 1, 0
    %v144 = vsel %vm123, 1, 0
    %v145 = vsel %vm124, 1, 0
    %v146 = vsel %vm125, 1, 0
    %vm147 = vcmp.eq.s32.totalorder %v143, 1
    %vm148 = vcmp.eq.s32.totalorder %v144, 1
    %vm149 = vcmp.eq.s32.totalorder %v145, 1
    %vm150 = vcmp.eq.s32.totalorder %v146, 1
    %v151 = vsel %vm147, %v142, 0.0
    %v152 = vsel %vm148, %v141, 0.0
    %v153 = vsel %vm149, %v140, 0.0
    %v154 = vsel %vm150, %v139, 0.0
    %v155 = vrot.slane %v130, 1
    %v156 = vrot.slane %v131, 1
    %v157 = vrot.slane %v132, 1
    %v158 = vrot.slane %v133, 1
    %vm159 = vcmp.lt.s32.totalorder %v70, 7
    %v160 = vsel %vm159, %v157, %v158
    %v161 = vsel %vm159, %v156, %v157
    %v162 = vsel %vm159, %v155, %v156
    %v163 = vsel %vm159, %v158, %v155
    %v164 = vsel %vm126, 1, 0
    %v165 = vsel %vm127, 1, 0
    %v166 = vsel %vm128, 1, 0
    %v167 = vsel %vm129, 1, 0
    %vm168 = vcmp.eq.s32.totalorder %v164, 1
    %vm169 = vcmp.eq.s32.totalorder %v165, 1
    %vm170 = vcmp.eq.s32.totalorder %v166, 1
    %vm171 = vcmp.eq.s32.totalorder %v167, 1
    %v172 = vsel %vm168, %v162, 0.0
    %v173 = vsel %vm169, %v161, 0.0
    %v174 = vsel %vm170, %v160, 0.0
    %v175 = vsel %vm171, %v163, 0.0
    %180 = vrot.lane.b32.xlu0 %v130, 64
    %v181 = vpop.permute.xlu0 %180
    %182 = vrot.lane.b32.xlu0 %v131, 64
    %v183 = vpop.permute.xlu0 %182
    %184 = vrot.lane.b32.xlu0 %v132, 64
    %v185 = vpop.permute.xlu0 %184
    %186 = vrot.lane.b32.xlu0 %v133, 64
    %v187 = vpop.permute.xlu0 %186
    %vm192 = vcmask 523264
    %v193 = vsel %vm192, %v151, %v181
    %v194 = vsel %vm192, %v152, %v183
    %v195 = vsel %vm192, %v153, %v185
    %v196 = vsel %vm192, %v154, %v187
    %v197 = vpack.c.bf16 %v194, %v193
    %v198 = vpack.c.bf16 %v173, %v172
    %v199 = vpack.c.bf16 %v196, %v195
    %v200 = vpack.c.bf16 %v175, %v174
    %v201 = vld [vmem:[#allocation5] sm:$0xf]
    %v202 = vld [vmem:[#allocation5 + $0x4] sm:$0xf]
    %v203 = vld [vmem:[#allocation5 + $0x8] sm:$0xf]
    %v204 = vld [vmem:[#allocation5 + $0xc] sm:$0xf]
    %v205 = vld [vmem:[#allocation5 + $0x10] sm:$0xf]
    %v206 = vld [vmem:[#allocation5 + $0x14] sm:$0xf]
    %v207 = vld [vmem:[#allocation5 + $0x18] sm:$0xf]
    %v208 = vld [vmem:[#allocation5 + $0x1c] sm:$0xf]
    %v209 = vld [vmem:[#allocation5 + $0x20] sm:$0xf]
    %v210 = vld [vmem:[#allocation5 + $0x24] sm:$0xf]
    %v211 = vld [vmem:[#allocation5 + $0x28] sm:$0xf]
    %v212 = vld [vmem:[#allocation5 + $0x2c] sm:$0xf]
    %v213 = vld [vmem:[#allocation5 + $0x30] sm:$0xf]
    %v214 = vld [vmem:[#allocation5 + $0x34] sm:$0xf]
    %v215 = vld [vmem:[#allocation5 + $0x38] sm:$0xf]
    %v216 = vld [vmem:[#allocation5 + $0x3c] sm:$0xf]
    %v217 = vld [vmem:[#allocation5 + $0x40] sm:$0xf]
    %v218 = vld [vmem:[#allocation5 + $0x44] sm:$0xf]
    %v219 = vld [vmem:[#allocation5 + $0x48] sm:$0xf]
    %v220 = vld [vmem:[#allocation5 + $0x4c] sm:$0xf]
    %v221 = vld [vmem:[#allocation5 + $0x50] sm:$0xf]
    %v222 = vld [vmem:[#allocation5 + $0x54] sm:$0xf]
    %v223 = vld [vmem:[#allocation5 + $0x58] sm:$0xf]
    %v224 = vld [vmem:[#allocation5 + $0x5c] sm:$0xf]
    %v249 = vunpack.c.l.b16 %v201
    %v250 = vunpack.c.l.b16 %v202
    %v251 = vunpack.c.l.b16 %v203
    %v252 = vunpack.c.l.b16 %v204
    %v253 = vunpack.c.l.b16 %v205
    %v254 = vunpack.c.l.b16 %v206
    %v255 = vunpack.c.l.b16 %v207
    %v256 = vunpack.c.l.b16 %v208
    %v257 = vunpack.c.l.b16 %v209
    %v258 = vunpack.c.l.b16 %v210
    %v259 = vunpack.c.l.b16 %v211
    %v260 = vunpack.c.l.b16 %v212
    %v261 = vunpack.c.l.b16 %v213
    %v262 = vunpack.c.l.b16 %v214
    %v263 = vunpack.c.l.b16 %v215
    %v264 = vunpack.c.l.b16 %v216
    %v265 = vunpack.c.l.b16 %v217
    %v266 = vunpack.c.l.b16 %v218
    %v267 = vunpack.c.l.b16 %v219
    %v268 = vunpack.c.l.b16 %v220
    %v269 = vunpack.c.l.b16 %v221
    %v270 = vunpack.c.l.b16 %v222
    %v271 = vunpack.c.l.b16 %v223
    %v272 = vunpack.c.l.b16 %v224
    %v273 = vpack.c.b16 %v250, %v249
    %v274 = vpack.c.b16 %v252, %v251
    %v275 = vpack.c.b16 %v254, %v253
    %v276 = vpack.c.b16 %v256, %v255
    %v277 = vpack.c.b16 %v258, %v257
    %v278 = vpack.c.b16 %v260, %v259
    %v279 = vpack.c.b16 %v262, %v261
    %v280 = vpack.c.b16 %v264, %v263
    %v281 = vpack.c.b16 %v266, %v265
    %v282 = vpack.c.b16 %v268, %v267
    %v283 = vpack.c.b16 %v270, %v269
    %v284 = vpack.c.b16 %v272, %v271
    %v298 = vsel %vm192, %v198, 0
    %v301 = vsel %vm192, %v200, 0
    %303 = vmatprep.subr.bf16.mxu0 0
    %304 = vmatpush1.bf16.msra.mxu0 %v273
    %305 = vmatprep.subr.bf16.mxu0 0
    %306 = vmatpush1.bf16.msra.mxu0 %v274
    %307 = vmatprep.subr.bf16.mxu0 0
    %308 = vmatpush1.bf16.msra.mxu0 %v275
    %309 = vmatprep.subr.bf16.mxu0 0
    %310 = vmatpush1.bf16.msra.mxu0 %v276
    %311 = vmatprep.subr.bf16.mxu0 0
    %312 = vmatpush1.bf16.msra.mxu0 %v277
    %313 = vmatprep.subr.bf16.mxu0 0
    %314 = vmatpush1.bf16.msra.mxu0 %v278
    %315 = vmatprep.subr.bf16.mxu0 0
    %316 = vmatpush1.bf16.msra.mxu0 %v279
    %317 = vmatprep.subr.bf16.mxu0 0
    %318 = vmatpush1.bf16.msra.mxu0 %v280
    %319 = vmatprep.subr.bf16.mxu0 0
    %320 = vmatpush1.bf16.msra.mxu0 %v281
    %321 = vmatprep.subr.bf16.mxu0 0
    %322 = vmatpush1.bf16.msra.mxu0 %v282
    %323 = vmatprep.subr.bf16.mxu0 0
    %324 = vmatpush1.bf16.msra.mxu0 %v283
    %325 = vmatprep.subr.bf16.mxu0 0
    %326 = vmatpush1.bf16.msra.mxu0 %v284
    %327 = vmatprep.subr.bf16.mxu0 0
    %328 = vmatpush1.bf16.msra.mxu0 0
    %329 = vmatprep.subr.bf16.mxu0 0
    %330 = vmatpush1.bf16.msra.mxu0 0
    %331 = vmatprep.subr.bf16.mxu0 0
    %332 = vmatpush1.bf16.msra.mxu0 0
    %333 = vmatprep.subr.bf16.mxu0 0
    %334 = vmatpush1.bf16.msra.mxu0 0
    %335 = vmatprep.mubr.bf16.mxu0 %v298
    %336 = vmatmul.mubr.bf16.gmra.mrb[0].mxu0 %v197
    %v337 = vpop.f32.mrb[0].mxu0
    %v338 = vadd.f32 0.0, %v337
    %v339 = vpop.f32.mrb[0].mxu0
    %v340 = vpop.f32.mrb[0].mxu0
    %v341 = vadd.f32 0.0, %v340
    %v342 = vpop.f32.mrb[0].mxu0
    %343 = vmatprep.mubr.bf16.mxu0 %v301
    %344 = vmatmul.mubr.bf16.gmra.mrb[0].mxu0 %v199
    %v345 = vpop.f32.mrb[0].mxu0
    %v346 = vadd.f32 0.0, %v345
    %v347 = vpop.f32.mrb[0].mxu0
    %v348 = vpop.f32.mrb[0].mxu0
    %v349 = vadd.f32 0.0, %v348
    %v350 = vpop.f32.mrb[0].mxu0
    %351 = vdwg.mxu0
    %v352 = vadd.f32 %v338, %v341
    %v353 = vadd.f32 %v352, %v346
    %v354 = vadd.f32 %v353, %v349
    %v355 = vrot.slane %v354, 4
    %v356 = vadd.f32 %v354, %v355
    %v357 = vrot.slane %v356, 2
    %v358 = vadd.f32 %v356, %v357
    %v359 = vrot.slane %v358, 1
    %v360 = vadd.f32 %v358, %v359
    %v361 = vmul.f32 %v338, %v338
    %v362 = vmul.f32 %v341, %v341
    %v363 = vmul.f32 %v346, %v346
    %v364 = vmul.f32 %v349, %v349
    %v365 = vadd.f32 %v361, %v362
    %v366 = vadd.f32 %v365, %v363
    %v367 = vadd.f32 %v366, %v364
    %v368 = vrot.slane %v367, 4
    %v369 = vadd.f32 %v367, %v368
    %v370 = vrot.slane %v369, 2
    %v371 = vadd.f32 %v369, %v370
    %v372 = vrot.slane %v371, 1
    %v373 = vadd.f32 %v371, %v372
    %vm374 = vcmask 1040384
    %v375 = vsel %vm374, %v360, %v373
    %376 = vrot.lane.b32.xlu0 %v375, 8
    %v377 = vpop.permute.xlu0 %376
    %v378 = vadd.f32 %v375, %v377
    %379 = vrot.lane.b32.xlu0 %v378, 16
    %v380 = vpop.permute.xlu0 %379
    %v381 = vadd.f32 %v378, %v380
    %382 = vrot.lane.b32.xlu0 %v381, 32
    %v383 = vpop.permute.xlu0 %382
    %v384 = vadd.f32 %v381, %v383
    %385 = vrot.lane.b32.xlu0 %v384, 64
    %v386 = vpop.permute.xlu0 %385
    %v387 = vadd.f32 %v384, %v386
    %v388 = vmul.f32 %v387, 0.001953125
    %v389 = vmul.f32 %v388, %v388
    %v391 = vrot.slane %v389, 7
    %v393 = vsub.f32 %v388, %v391
    %v394 = vld [vmem:[%s3] sm:$0x1]
    %v395 = vadd.f32 %v393, 1e-05
    %v396 = vrsqrt.pop %v395
    %v399 = vunpack.c.l.s4 1966171168
    %v400 = vunpack.c.0.s8 %v399
    %v401 = vlaneseq
    %v402 = vshrl.u32 %v401, 7
    %v403 = vsub.s32 %v400, %v402
    %v404 = vrot.slane %v396, %v403
    %v405 = vcombine.high %v404, %v404
    %v407 = vunpack.c.l.s4 1966171168
    %v408 = vunpack.c.0.s8 %v407
    %v409 = vlaneseq
    %v410 = vshrl.u32 %v409, 7
    %v411 = vsub.s32 %v408, %v410
    %v412 = vrot.slane %v405, %v411
    %v414 = vmul.f32 %v394, %v412
    %v415 = vld [vmem:[%s4] sm:$0x1]
    %v416 = vmul.f32 %v388, %v414
    %v417 = vsub.f32 %v415, %v416
    %v419 = vlaneseq
    %v420 = vshrl.u32 %v419, 7
    %v421 = vsub.s32 0, %v420
    %v422 = vrot.slane %v414, %v421
    %v424 = vmul.f32 %v338, %v422
    %v425 = vmul.f32 %v341, %v422
    %v426 = vmul.f32 %v346, %v422
    %v427 = vmul.f32 %v349, %v422
    %v429 = vlaneseq
    %v430 = vshrl.u32 %v429, 7
    %v431 = vsub.s32 0, %v430
    %v432 = vrot.slane %v417, %v431
    %v434 = vadd.f32 %v424, %v432
    %v435 = vadd.f32 %v425, %v432
    %v436 = vadd.f32 %v426, %v432
    %v437 = vadd.f32 %v427, %v432
    %v438 = vmax.f32 %v434, 0.0
    %v439 = vmax.f32 %v435, 0.0
    %v440 = vmax.f32 %v436, 0.0
    %v441 = vmax.f32 %v437, 0.0
    %v442 = vrot.slane %v438, 7
    %v443 = vrot.slane %v439, 7
    %v444 = vrot.slane %v440, 7
    %v445 = vrot.slane %v441, 7
    %v446 = vsel %vm138, %v444, %v445
    %v447 = vsel %vm138, %v443, %v444
    %v448 = vsel %vm138, %v442, %v443
    %v449 = vsel %vm138, %v445, %v442
    %v450 = vsel %vm147, %v449, 0.0
    %v451 = vsel %vm148, %v448, 0.0
    %v452 = vsel %vm149, %v447, 0.0
    %v453 = vsel %vm150, %v446, 0.0
    %v454 = vrot.slane %v438, 1
    %v455 = vrot.slane %v439, 1
    %v456 = vrot.slane %v440, 1
    %v457 = vrot.slane %v441, 1
    %v458 = vsel %vm159, %v456, %v457
    %v459 = vsel %vm159, %v455, %v456
    %v460 = vsel %vm159, %v454, %v455
    %v461 = vsel %vm159, %v457, %v454
    %v462 = vsel %vm168, %v460, 0.0
    %v463 = vsel %vm169, %v459, 0.0
    %v464 = vsel %vm170, %v458, 0.0
    %v465 = vsel %vm171, %v461, 0.0
    %v466 = vpack.c.bf16 %v451, %v450
    %v467 = vpack.c.bf16 %v439, %v438
    %v468 = vpack.c.bf16 %v463, %v462
    %v469 = vpack.c.bf16 %v453, %v452
    %v470 = vpack.c.bf16 %v441, %v440
    %v471 = vpack.c.bf16 %v465, %v464
    %v472 = vld [vmem:[#allocation7] sm:$0xf]
    %v473 = vld [vmem:[#allocation7 + $0x4] sm:$0xf]
    %v474 = vld [vmem:[#allocation7 + $0x8] sm:$0xf]
    %v475 = vld [vmem:[#allocation7 + $0xc] sm:$0xf]
    %v476 = vld [vmem:[#allocation7 + $0x10] sm:$0xf]
    %v477 = vld [vmem:[#allocation7 + $0x14] sm:$0xf]
    %v478 = vld [vmem:[#allocation7 + $0x18] sm:$0xf]
    %v479 = vld [vmem:[#allocation7 + $0x1c] sm:$0xf]
    %v480 = vld [vmem:[#allocation7 + $0x20] sm:$0xf]
    %v481 = vld [vmem:[#allocation7 + $0x24] sm:$0xf]
    %v482 = vld [vmem:[#allocation7 + $0x28] sm:$0xf]
    %v483 = vld [vmem:[#allocation7 + $0x2c] sm:$0xf]
    %v484 = vld [vmem:[#allocation7 + $0x30] sm:$0xf]
    %v485 = vld [vmem:[#allocation7 + $0x34] sm:$0xf]
    %v486 = vld [vmem:[#allocation7 + $0x38] sm:$0xf]
    %v487 = vld [vmem:[#allocation7 + $0x3c] sm:$0xf]
    %v488 = vld [vmem:[#allocation7 + $0x40] sm:$0xf]
    %v489 = vld [vmem:[#allocation7 + $0x44] sm:$0xf]
    %v490 = vld [vmem:[#allocation7 + $0x48] sm:$0xf]
    %v491 = vld [vmem:[#allocation7 + $0x4c] sm:$0xf]
    %v492 = vld [vmem:[#allocation7 + $0x50] sm:$0xf]
    %v493 = vld [vmem:[#allocation7 + $0x54] sm:$0xf]
    %v494 = vld [vmem:[#allocation7 + $0x58] sm:$0xf]
    %v495 = vld [vmem:[#allocation7 + $0x5c] sm:$0xf]
    %v496 = vld [vmem:[#allocation7 + $0x60] sm:$0xf]
    %v497 = vld [vmem:[#allocation7 + $0x64] sm:$0xf]
    %v498 = vld [vmem:[#allocation7 + $0x68] sm:$0xf]
    %v499 = vld [vmem:[#allocation7 + $0x6c] sm:$0xf]
    %v500 = vld [vmem:[#allocation7 + $0x70] sm:$0xf]
    %v501 = vld [vmem:[#allocation7 + $0x74] sm:$0xf]
    %v502 = vld [vmem:[#allocation7 + $0x78] sm:$0xf]
    %v503 = vld [vmem:[#allocation7 + $0x7c] sm:$0xf]
    %v504 = vld [vmem:[#allocation7 + $0x80] sm:$0xf]
    %v505 = vld [vmem:[#allocation7 + $0x84] sm:$0xf]
    %v506 = vld [vmem:[#allocation7 + $0x88] sm:$0xf]
    %v507 = vld [vmem:[#allocation7 + $0x8c] sm:$0xf]
    %v508 = vld [vmem:[#allocation7 + $0x90] sm:$0xf]
    %v509 = vld [vmem:[#allocation7 + $0x94] sm:$0xf]
    %v510 = vld [vmem:[#allocation7 + $0x98] sm:$0xf]
    %v511 = vld [vmem:[#allocation7 + $0x9c] sm:$0xf]
    %v512 = vld [vmem:[#allocation7 + $0xa0] sm:$0xf]
    %v513 = vld [vmem:[#allocation7 + $0xa4] sm:$0xf]
    %v514 = vld [vmem:[#allocation7 + $0xa8] sm:$0xf]
    %v515 = vld [vmem:[#allocation7 + $0xac] sm:$0xf]
    %v516 = vld [vmem:[#allocation7 + $0xb0] sm:$0xf]
    %v517 = vld [vmem:[#allocation7 + $0xb4] sm:$0xf]
    %v518 = vld [vmem:[#allocation7 + $0xb8] sm:$0xf]
    %v519 = vld [vmem:[#allocation7 + $0xbc] sm:$0xf]
    %v568 = vunpack.c.l.b16 %v472
    %v569 = vunpack.c.l.b16 %v473
    %v570 = vunpack.c.l.b16 %v474
    %v571 = vunpack.c.l.b16 %v475
    %v572 = vunpack.c.l.b16 %v476
    %v573 = vunpack.c.l.b16 %v477
    %v574 = vunpack.c.l.b16 %v478
    %v575 = vunpack.c.l.b16 %v479
    %v576 = vunpack.c.l.b16 %v480
    %v577 = vunpack.c.l.b16 %v481
    %v578 = vunpack.c.l.b16 %v482
    %v579 = vunpack.c.l.b16 %v483
    %v580 = vunpack.c.l.b16 %v484
    %v581 = vunpack.c.l.b16 %v485
    %v582 = vunpack.c.l.b16 %v486
    %v583 = vunpack.c.l.b16 %v487
    %v584 = vunpack.c.l.b16 %v488
    %v585 = vunpack.c.l.b16 %v489
    %v586 = vunpack.c.l.b16 %v490
    %v587 = vunpack.c.l.b16 %v491
    %v588 = vunpack.c.l.b16 %v492
    %v589 = vunpack.c.l.b16 %v493
    %v590 = vunpack.c.l.b16 %v494
    %v591 = vunpack.c.l.b16 %v495
    %v592 = vunpack.c.l.b16 %v496
    %v593 = vunpack.c.l.b16 %v497
    %v594 = vunpack.c.l.b16 %v498
    %v595 = vunpack.c.l.b16 %v499
    %v596 = vunpack.c.l.b16 %v500
    %v597 = vunpack.c.l.b16 %v501
    %v598 = vunpack.c.l.b16 %v502
    %v599 = vunpack.c.l.b16 %v503
    %v600 = vunpack.c.l.b16 %v504
    %v601 = vunpack.c.l.b16 %v505
    %v602 = vunpack.c.l.b16 %v506
    %v603 = vunpack.c.l.b16 %v507
    %v604 = vunpack.c.l.b16 %v508
    %v605 = vunpack.c.l.b16 %v509
    %v606 = vunpack.c.l.b16 %v510
    %v607 = vunpack.c.l.b16 %v511
    %v608 = vunpack.c.l.b16 %v512
    %v609 = vunpack.c.l.b16 %v513
    %v610 = vunpack.c.l.b16 %v514
    %v611 = vunpack.c.l.b16 %v515
    %v612 = vunpack.c.l.b16 %v516
    %v613 = vunpack.c.l.b16 %v517
    %v614 = vunpack.c.l.b16 %v518
    %v615 = vunpack.c.l.b16 %v519
    %v616 = vpack.c.b16 %v569, %v568
    %v617 = vpack.c.b16 %v571, %v570
    %v618 = vpack.c.b16 %v573, %v572
    %v619 = vpack.c.b16 %v575, %v574
    %v620 = vpack.c.b16 %v577, %v576
    %v621 = vpack.c.b16 %v579, %v578
    %v622 = vpack.c.b16 %v581, %v580
    %v623 = vpack.c.b16 %v583, %v582
    %v624 = vpack.c.b16 %v585, %v584
    %v625 = vpack.c.b16 %v587, %v586
    %v626 = vpack.c.b16 %v589, %v588
    %v627 = vpack.c.b16 %v591, %v590
    %v628 = vpack.c.b16 %v593, %v592
    %v629 = vpack.c.b16 %v595, %v594
    %v630 = vpack.c.b16 %v597, %v596
    %v631 = vpack.c.b16 %v599, %v598
    %v632 = vpack.c.b16 %v601, %v600
    %v633 = vpack.c.b16 %v603, %v602
    %v634 = vpack.c.b16 %v605, %v604
    %v635 = vpack.c.b16 %v607, %v606
    %v636 = vpack.c.b16 %v609, %v608
    %v637 = vpack.c.b16 %v611, %v610
    %v638 = vpack.c.b16 %v613, %v612
    %v639 = vpack.c.b16 %v615, %v614
    %664 = vmatprep.subr.bf16.mxu0 0
    %665 = vmatpush1.bf16.msra.mxu0 %v616
    %666 = vmatprep.subr.bf16.mxu0 0
    %667 = vmatpush1.bf16.msra.mxu0 %v617
    %668 = vmatprep.subr.bf16.mxu0 0
    %669 = vmatpush1.bf16.msra.mxu0 %v618
    %670 = vmatprep.subr.bf16.mxu0 0
    %671 = vmatpush1.bf16.msra.mxu0 %v619
    %672 = vmatprep.subr.bf16.mxu0 0
    %673 = vmatpush1.bf16.msra.mxu0 %v620
    %674 = vmatprep.subr.bf16.mxu0 0
    %675 = vmatpush1.bf16.msra.mxu0 %v621
    %676 = vmatprep.subr.bf16.mxu0 0
    %677 = vmatpush1.bf16.msra.mxu0 %v622
    %678 = vmatprep.subr.bf16.mxu0 0
    %679 = vmatpush1.bf16.msra.mxu0 %v623
    %680 = vmatprep.subr.bf16.mxu0 0
    %681 = vmatpush1.bf16.msra.mxu0 %v624
    %682 = vmatprep.subr.bf16.mxu0 0
    %683 = vmatpush1.bf16.msra.mxu0 %v625
    %684 = vmatprep.subr.bf16.mxu0 0
    %685 = vmatpush1.bf16.msra.mxu0 %v626
    %686 = vmatprep.subr.bf16.mxu0 0
    %687 = vmatpush1.bf16.msra.mxu0 %v627
    %688 = vmatprep.subr.bf16.mxu0 0
    %689 = vmatpush1.bf16.msra.mxu0 %v628
    %690 = vmatprep.subr.bf16.mxu0 0
    %691 = vmatpush1.bf16.msra.mxu0 %v629
    %692 = vmatprep.subr.bf16.mxu0 0
    %693 = vmatpush1.bf16.msra.mxu0 %v630
    %694 = vmatprep.subr.bf16.mxu0 0
    %695 = vmatpush1.bf16.msra.mxu0 %v631
    %696 = vmatprep.mubr.bf16.mxu0 %v467
    %697 = vmatmul.mubr.bf16.gmra.mrb[0].mxu0 %v466
    %v698 = vpop.f32.mrb[0].mxu0
    %v699 = vadd.f32 0.0, %v698
    %v700 = vpop.f32.mrb[0].mxu0
    %v701 = vpop.f32.mrb[0].mxu0
    %v702 = vadd.f32 0.0, %v701
    %v703 = vpop.f32.mrb[0].mxu0
    %704 = vmatprep.mubr.bf16.mxu0 %v470
    %705 = vmatmul.mubr.bf16.gmra.mrb[0].mxu0 %v469
    %v706 = vpop.f32.mrb[0].mxu0
    %v707 = vadd.f32 0.0, %v706
    %v708 = vpop.f32.mrb[0].mxu0
    %v709 = vpop.f32.mrb[0].mxu0
    %v710 = vadd.f32 0.0, %v709
    %v711 = vpop.f32.mrb[0].mxu0
    %712 = vdwg.mxu0
    %713 = vmatprep.subr.bf16.mxu0 0
    %714 = vmatpush1.bf16.msra.mxu0 %v632
    %715 = vmatprep.subr.bf16.mxu0 0
    %716 = vmatpush1.bf16.msra.mxu0 %v633
    %717 = vmatprep.subr.bf16.mxu0 0
    %718 = vmatpush1.bf16.msra.mxu0 %v634
    %719 = vmatprep.subr.bf16.mxu0 0
    %720 = vmatpush1.bf16.msra.mxu0 %v635
    %721 = vmatprep.subr.bf16.mxu0 0
    %722 = vmatpush1.bf16.msra.mxu0 %v636
    %723 = vmatprep.subr.bf16.mxu0 0
    %724 = vmatpush1.bf16.msra.mxu0 %v637
    %725 = vmatprep.subr.bf16.mxu0 0
    %726 = vmatpush1.bf16.msra.mxu0 %v638
    %727 = vmatprep.subr.bf16.mxu0 0
    %728 = vmatpush1.bf16.msra.mxu0 %v639
    %729 = vmatprep.subr.bf16.mxu0 0
    %730 = vmatpush1.bf16.msra.mxu0 0
    %731 = vmatprep.subr.bf16.mxu0 0
    %732 = vmatpush1.bf16.msra.mxu0 0
    %733 = vmatprep.subr.bf16.mxu0 0
    %734 = vmatpush1.bf16.msra.mxu0 0
    %735 = vmatprep.subr.bf16.mxu0 0
    %736 = vmatpush1.bf16.msra.mxu0 0
    %737 = vmatprep.subr.bf16.mxu0 0
    %738 = vmatpush1.bf16.msra.mxu0 0
    %739 = vmatprep.subr.bf16.mxu0 0
    %740 = vmatpush1.bf16.msra.mxu0 0
    %741 = vmatprep.subr.bf16.mxu0 0
    %742 = vmatpush1.bf16.msra.mxu0 0
    %743 = vmatprep.subr.bf16.mxu0 0
    %744 = vmatpush1.bf16.msra.mxu0 0
    %745 = vmatprep.mubr.bf16.mxu0 0
    %746 = vmatmul.mubr.bf16.gmra.mrb[0].mxu0 %v468
    %v747 = vpop.f32.mrb[0].mxu0
    %v748 = vadd.f32 %v699, %v747
    %v749 = vpop.f32.mrb[0].mxu0
    %v750 = vpop.f32.mrb[0].mxu0
    %v751 = vadd.f32 %v702, %v750
    %v752 = vpop.f32.mrb[0].mxu0
    %753 = vmatprep.mubr.bf16.mxu0 0
    %754 = vmatmul.mubr.bf16.gmra.mrb[0].mxu0 %v471
    %v755 = vpop.f32.mrb[0].mxu0
    %v756 = vadd.f32 %v707, %v755
    %v757 = vpop.f32.mrb[0].mxu0
    %v758 = vpop.f32.mrb[0].mxu0
    %v759 = vadd.f32 %v710, %v758
    %v760 = vpop.f32.mrb[0].mxu0
    %761 = vdwg.mxu0
    %v762 = vadd.f32 %v748, %v751
    %v763 = vadd.f32 %v762, %v756
    %v764 = vadd.f32 %v763, %v759
    %v765 = vrot.slane %v764, 4
    %v766 = vadd.f32 %v764, %v765
    %v767 = vrot.slane %v766, 2
    %v768 = vadd.f32 %v766, %v767
    %v769 = vrot.slane %v768, 1
    %v770 = vadd.f32 %v768, %v769
    %v771 = vmul.f32 %v748, %v748
    %v772 = vmul.f32 %v751, %v751
    %v773 = vmul.f32 %v756, %v756
    %v774 = vmul.f32 %v759, %v759
    %v775 = vadd.f32 %v771, %v772
    %v776 = vadd.f32 %v775, %v773
    %v777 = vadd.f32 %v776, %v774
    %v778 = vrot.slane %v777, 4
    %v779 = vadd.f32 %v777, %v778
    %v780 = vrot.slane %v779, 2
    %v781 = vadd.f32 %v779, %v780
    %v782 = vrot.slane %v781, 1
    %v783 = vadd.f32 %v781, %v782
    %v784 = vsel %vm374, %v770, %v783
    %785 = vrot.lane.b32.xlu0 %v784, 8
    %v786 = vpop.permute.xlu0 %785
    %v787 = vadd.f32 %v784, %v786
    %788 = vrot.lane.b32.xlu0 %v787, 16
    %v789 = vpop.permute.xlu0 %788
    %v790 = vadd.f32 %v787, %v789
    %791 = vrot.lane.b32.xlu0 %v790, 32
    %v792 = vpop.permute.xlu0 %791
    %v793 = vadd.f32 %v790, %v792
    %794 = vrot.lane.b32.xlu0 %v793, 64
    %v795 = vpop.permute.xlu0 %794
    %v796 = vadd.f32 %v793, %v795
    %v797 = vmul.f32 %v796, 0.001953125
    %v798 = vmul.f32 %v797, %v797
    %v800 = vrot.slane %v798, 7
    %v802 = vsub.f32 %v797, %v800
    %v803 = vld [vmem:[%s5] sm:$0x1]
    %v804 = vadd.f32 %v802, 1e-05
    %v805 = vrsqrt.pop %v804
    %v808 = vunpack.c.l.s4 1966171168
    %v809 = vunpack.c.0.s8 %v808
    %v810 = vlaneseq
    %v811 = vshrl.u32 %v810, 7
    %v812 = vsub.s32 %v809, %v811
    %v813 = vrot.slane %v805, %v812
    %v814 = vcombine.high %v813, %v813
    %v816 = vunpack.c.l.s4 1966171168
    %v817 = vunpack.c.0.s8 %v816
    %v818 = vlaneseq
    %v819 = vshrl.u32 %v818, 7
    %v820 = vsub.s32 %v817, %v819
    %v821 = vrot.slane %v814, %v820
    %v823 = vmul.f32 %v803, %v821
    %v824 = vld [vmem:[%s6] sm:$0x1]
    %v825 = vmul.f32 %v797, %v823
    %v826 = vsub.f32 %v824, %v825
    %v828 = vlaneseq
    %v829 = vshrl.u32 %v828, 7
    %v830 = vsub.s32 0, %v829
    %v831 = vrot.slane %v823, %v830
    %v833 = vmul.f32 %v748, %v831
    %v834 = vmul.f32 %v751, %v831
    %v835 = vmul.f32 %v756, %v831
    %v836 = vmul.f32 %v759, %v831
    %v838 = vlaneseq
    %v839 = vshrl.u32 %v838, 7
    %v840 = vsub.s32 0, %v839
    %v841 = vrot.slane %v826, %v840
    %v843 = vadd.f32 %v833, %v841
    %v844 = vadd.f32 %v834, %v841
    %v845 = vadd.f32 %v835, %v841
    %v846 = vadd.f32 %v836, %v841
    %v847 = vmax.f32 %v843, 0.0
    %v848 = vmax.f32 %v844, 0.0
    %v849 = vmax.f32 %v845, 0.0
    %v850 = vmax.f32 %v846, 0.0
    %851 = vst [vmem:[#allocation8] sm:$0xff] %v847
    %852 = vst [vmem:[#allocation8 + $0x8] sm:$0xff] %v848
    %853 = vst [vmem:[#allocation8 + $0x10] sm:$0xff] %v849
    %854 = vst [vmem:[#allocation8 + $0x18] sm:$0xff] %v850
    // Predicated region
    $region42: #{tpu_custom_call.1} parent=1 // pred_check
      _
    $region43: #{tpu_custom_call.1} parent=1 // pred_check_branch
      %856 = sbr.rel (0) target = $region45
    $region44: #{tpu_custom_call.1} parent=1 // pred_region
      %s858 = ssub.s32 512, 512
      %859 = vsyncadd [#allocation4], %s858
      %s860 = sshll.u32 [#allocation8], 4
      %s861 = int_to_ptr.vmem [resolvable:$true] %s860
      %866 = dma.vmem_to_hbm [thread:$0]  %s861, 512, %s7, [#allocation4], 128, 128, 8
    $region45: #{tpu_custom_call.1} parent=1 // pred_fallthru
      _
    // Predicated region
    $region46: #{tpu_custom_call.1} parent=1 // pred_check
      _
    $region47: #{tpu_custom_call.1} parent=1 // pred_check_branch
      %868 = sbr.rel (0) target = $region49
    $region48: #{tpu_custom_call.1} parent=1 // pred_region
      %869 = dma.done [#allocation4], 512
    $region49: #{tpu_custom_call.1} parent=1 // pred_fallthru
      _
    %870 = vsyncpa [#allocation3], 1
    %871 = vsyncpa [#allocation6], 1
    %872 = vsyncpa [#allocation4], 1

</llo_original>
